<compile_context>
chip_gen: v7x
topology: tpu7x:2x2x1
jax: 0.10.0
libtpu: 0.0.40
codegen_flags: <defaults>
</compile_context>

<pallas_src>
import functools

import jax
import jax.numpy as jnp
from jax.experimental import pallas as pl
from jax.experimental.pallas import tpu as pltpu

EPS = 1e-5  # nn.LayerNorm default

# bf16 operands (f32 accumulation) only when the MXU is actually there;
# plain f32 on CPU / interpret backends (fixes the DotThunk bf16 error).
_MM_DTYPE = jnp.bfloat16 if jax.default_backend() == "tpu" else jnp.float32


# ---------------------------------------------------------------------------
# small helpers
# ---------------------------------------------------------------------------
def _layer_norm(x, g, b):
    mu = jnp.mean(x, axis=-1, keepdims=True)
    var = jnp.mean(jnp.square(x - mu), axis=-1, keepdims=True)
    return (x - mu) * jax.lax.rsqrt(var + EPS) * g + b


def _mm(a, b):
    """2-D matmul on the MXU: low-precision operands, f32 accumulation."""
    return jnp.dot(a.astype(_MM_DTYPE), b.astype(_MM_DTYPE),
                   preferred_element_type=jnp.float32)


def _bmm(eq, a, b):
    """Batched (leading batch dim) matmul on the MXU, f32 accumulation."""
    return jnp.einsum(eq, a.astype(_MM_DTYPE), b.astype(_MM_DTYPE),
                      preferred_element_type=jnp.float32)


def _full_spec(shape):
    nd = len(shape)
    return pl.BlockSpec(tuple(shape), lambda *_, nd=nd: (0,) * nd)


def _pick_tile(total, target):
    """Largest divisor of `total` that is <= target and a multiple of 8."""
    if total <= target:
        return total
    for t in range(target, 7, -1):
        if total % t == 0 and t % 8 == 0:
            return t
    return total


def _pick_div(total, target):
    t = min(total, target)
    while total % t:
        t -= 1
    return t


@functools.lru_cache(maxsize=None)
def _cparams():
    """All grids here are 2-D and fully parallel; size the scoped-VMEM limit
    per generation (~7/8 of physical, capped at 112 MiB)."""
    kwargs = dict(dimension_semantics=("parallel", "parallel"))
    try:
        info = pltpu.get_tpu_info()
        v = int(min(info.vmem_capacity_bytes * 7 // 8, 112 * 1024 * 1024))
        if v >= (16 << 20):
            kwargs["vmem_limit_bytes"] = v
    except Exception:
        pass
    return pltpu.CompilerParams(**kwargs)


# ---------------------------------------------------------------------------
# OuterMean:  out = x + proj_out(mean_m(left ⊗ right))
# ---------------------------------------------------------------------------
def _om_proj_kernel(msa_ref, lng, lnb, wlr, blr, lcm_ref, rcm_ref):
    xn = _layer_norm(msa_ref[0], lng[0], lnb[0])          # (T, D)
    lr = _mm(xn, wlr[...]) + blr[0]                       # fused left|right
    h = lr.shape[-1] // 2
    lcm_ref[0] = lr[:, :h].astype(lcm_ref.dtype).T        # (H, T) channel-major
    rcm_ref[0] = lr[:, h:].astype(rcm_ref.dtype).T


def _om_outer_kernel(l_ref, r_ref, out_ref):
    # outer[h, i, j] = (1/M) * sum_m left[h, m, i] * right[h, m, j]
    inv_m = 1.0 / l_ref.shape[2]
    dn = (((0,), (0,)), ((), ()))                          # A^T @ B
    for c in range(l_ref.shape[1]):
        out_ref[0, c] = jax.lax.dot_general(
            l_ref[0, c], r_ref[0, c], dn,
            preferred_element_type=jnp.float32) * inv_m


def _om_out_kernel(outer_ref, x_ref, wo, bo, out_ref):
    o = outer_ref[0].T                                     # (T, H) token-major
    out_ref[0] = _mm(o, wo[...]) + bo[0] + x_ref[0]        # fused residual


def outer_mean_residual(x, msa, p):
    B, M, S, D = msa.shape
    H = p['wo'].shape[0]
    MS, SS = M * S, S * S
    dt = _MM_DTYPE
    msa_flat = msa.reshape(B, MS, D)
    x_flat = x.reshape(B, SS, D)
    tok_in = _pick_tile(MS, 1024)
    tok_out = _pick_tile(SS, 1024)

    lcm, rcm = pl.pallas_call(
        _om_proj_kernel,
        out_shape=(jax.ShapeDtypeStruct((B, H, MS), dt),
                   jax.ShapeDtypeStruct((B, H, MS), dt)),
        grid=(B, MS // tok_in),
        in_specs=[pl.BlockSpec((1, tok_in, D), lambda b, t: (b, t, 0))]
                 + [_full_spec(w.shape) for w in
                    (p['ln_g'], p['ln_b'], p['wlr'], p['blr'])],
        out_specs=(pl.BlockSpec((1, H, tok_in), lambda b, t: (b, 0, t)),
                   pl.BlockSpec((1, H, tok_in), lambda b, t: (b, 0, t))),
        compiler_params=_cparams(),
    )(msa_flat, p['ln_g'], p['ln_b'], p['wlr'], p['blr'])

    l4 = lcm.reshape(B, H, M, S)
    r4 = rcm.reshape(B, H, M, S)
    ht = _pick_div(H, 8)
    outer = pl.pallas_call(
        _om_outer_kernel,
        out_shape=jax.ShapeDtypeStruct((B, H, S, S), jnp.float32),
        grid=(B, H // ht),
        in_specs=[pl.BlockSpec((1, ht, M, S), lambda b, h: (b, h, 0, 0)),
                  pl.BlockSpec((1, ht, M, S), lambda b, h: (b, h, 0, 0))],
        out_specs=pl.BlockSpec((1, ht, S, S), lambda b, h: (b, h, 0, 0)),
        compiler_params=_cparams(),
    )(l4, r4)

    outer_f = outer.reshape(B, H, SS)
    out = pl.pallas_call(
        _om_out_kernel,
        out_shape=jax.ShapeDtypeStruct((B, SS, D), jnp.float32),
        grid=(B, SS // tok_out),
        in_specs=[pl.BlockSpec((1, H, tok_out), lambda b, t: (b, 0, t)),
                  pl.BlockSpec((1, tok_out, D), lambda b, t: (b, t, 0))]
                 + [_full_spec(w.shape) for w in (p['wo'], p['bo'])],
        out_specs=pl.BlockSpec((1, tok_out, D), lambda b, t: (b, t, 0)),
        compiler_params=_cparams(),
    )(outer_f, x_flat, p['wo'], p['bo'])
    return out.reshape(B, S, S, D)


# ---------------------------------------------------------------------------
# TriangleMultiplicativeModule:  out = x + Triangle(x)
# ---------------------------------------------------------------------------
def _tri_proj_kernel(x_ref, lng, lnb, wp, bp, lcm_ref, rcm_ref, gate_ref):
    xn = _layer_norm(x_ref[0], lng[0], lnb[0])             # (T, D)
    proj = _mm(xn, wp[...]) + bp[0]                        # fused D -> 5H
    h = proj.shape[-1] // 5
    left = proj[:, 0 * h:1 * h] * jax.nn.sigmoid(proj[:, 2 * h:3 * h])
    right = proj[:, 1 * h:2 * h] * jax.nn.sigmoid(proj[:, 3 * h:4 * h])
    gate_ref[0] = jax.nn.sigmoid(proj[:, 4 * h:5 * h])
    lcm_ref[0] = left.astype(lcm_ref.dtype).T              # channel-major
    rcm_ref[0] = right.astype(rcm_ref.dtype).T


def _tri_mix_kernel(l_ref, r_ref, out_ref, *, outgoing):
    for c in range(l_ref.shape[1]):
        L = l_ref[0, c]                                    # (N, N)
        R = r_ref[0, c]
        if outgoing:
            # mixed[i, j] = sum_k L[i, k] * R[j, k]        (A @ B^T)
            res = jax.lax.dot_general(L, R, (((1,), (1,)), ((), ())),
                                      preferred_element_type=jnp.float32)
        else:
            # mixed[i, j] = sum_k R[k, i] * L[k, j]        (A^T @ B)
            res = jax.lax.dot_general(R, L, (((0,), (0,)), ((), ())),
                                      preferred_element_type=jnp.float32)
        out_ref[0, c] = res


def _tri_out_kernel(mix_ref, gate_ref, x_ref, ong, onb, wo, bo, out_ref):
    m = mix_ref[0].T                                       # (T, H) token-major
    m = _layer_norm(m, ong[0], onb[0]) * gate_ref[0]
    out_ref[0] = _mm(m, wo[...]) + bo[0] + x_ref[0]        # fused residual


def triangle_multiply_residual(x, p, outgoing):
    B, N, _, D = x.shape
    H = p['on_g'].shape[-1]
    NN = N * N
    dt = _MM_DTYPE
    x_flat = x.reshape(B, NN, D)
    tok = _pick_tile(NN, 1024)

    lcm, rcm, gate = pl.pallas_call(
        _tri_proj_kernel,
        out_shape=(jax.ShapeDtypeStruct((B, H, NN), dt),
                   jax.ShapeDtypeStruct((B, H, NN), dt),
                   jax.ShapeDtypeStruct((B, NN, H), jnp.float32)),
        grid=(B, NN // tok),
        in_specs=[pl.BlockSpec((1, tok, D), lambda b, t: (b, t, 0))]
                 + [_full_spec(w.shape) for w in
                    (p['ln_g'], p['ln_b'], p['wp'], p['bp'])],
        out_specs=(pl.BlockSpec((1, H, tok), lambda b, t: (b, 0, t)),
                   pl.BlockSpec((1, H, tok), lambda b, t: (b, 0, t)),
                   pl.BlockSpec((1, tok, H), lambda b, t: (b, t, 0))),
        compiler_params=_cparams(),
    )(x_flat, p['ln_g'], p['ln_b'], p['wp'], p['bp'])

    l4 = lcm.reshape(B, H, N, N)
    r4 = rcm.reshape(B, H, N, N)
    ht = _pick_div(H, 8)
    mixed = pl.pallas_call(
        functools.partial(_tri_mix_kernel, outgoing=outgoing),
        out_shape=jax.ShapeDtypeStruct((B, H, N, N), jnp.float32),
        grid=(B, H // ht),
        in_specs=[pl.BlockSpec((1, ht, N, N), lambda b, h: (b, h, 0, 0)),
                  pl.BlockSpec((1, ht, N, N), lambda b, h: (b, h, 0, 0))],
        out_specs=pl.BlockSpec((1, ht, N, N), lambda b, h: (b, h, 0, 0)),
        compiler_params=_cparams(),
    )(l4, r4)

    mixed_f = mixed.reshape(B, H, NN)
    out = pl.pallas_call(
        _tri_out_kernel,
        out_shape=jax.ShapeDtypeStruct((B, NN, D), jnp.float32),
        grid=(B, NN // tok),
        in_specs=[pl.BlockSpec((1, H, tok), lambda b, t: (b, 0, t)),
                  pl.BlockSpec((1, tok, H), lambda b, t: (b, t, 0)),
                  pl.BlockSpec((1, tok, D), lambda b, t: (b, t, 0))]
                 + [_full_spec(w.shape) for w in
                    (p['on_g'], p['on_b'], p['wo'], p['bo'])],
        out_specs=pl.BlockSpec((1, tok, D), lambda b, t: (b, t, 0)),
        compiler_params=_cparams(),
    )(mixed_f, gate, x_flat, p['on_g'], p['on_b'], p['wo'], p['bo'])
    return out.reshape(B, N, N, D)


# ---------------------------------------------------------------------------
# AxialAttention (row / col):  out = x + AxialAttn(x, edges=x)
# ---------------------------------------------------------------------------
def _axial_attn_kernel(xs_ref, bias_ref, lng, lnb, wqkvg, bg, wo, bo, out_ref,
                       *, heads, dim_head):
    xs = xs_ref[0]                                          # (Rt, Np, D)
    Rt, Np, D = xs.shape
    inner = heads * dim_head
    scale = dim_head ** -0.5

    flat = xs.reshape(Rt * Np, D)
    xn = _layer_norm(flat, lng[0], lnb[0])
    proj = _mm(xn, wqkvg[...])                              # fused q|k|v|gate
    gates = jax.nn.sigmoid(proj[:, 3 * inner:4 * inner] + bg[0])
    p3 = proj.reshape(Rt, Np, 4 * inner)

    outs = []
    for h in range(heads):                                  # heads is small
        q_h = p3[:, :, h * dim_head:(h + 1) * dim_head] * scale
        k_h = p3[:, :, inner + h * dim_head:inner + (h + 1) * dim_head]
        v_h = p3[:, :, 2 * inner + h * dim_head:2 * inner + (h + 1) * dim_head]
        dots = _bmm('rid,rjd->rij', q_h, k_h)               # (Rt, Np, Np)
        dots = dots + bias_ref[0, h][None]                  # pairwise edge bias
        m = jnp.max(dots, axis=-1, keepdims=True)
        e = jnp.exp(dots - m)
        attn = e / jnp.sum(e, axis=-1, keepdims=True)
        outs.append(_bmm('rij,rjd->rid', attn, v_h))        # (Rt, Np, dh)
    out = jnp.concatenate(outs, axis=-1)                    # (Rt, Np, inner)
    out = out.reshape(Rt * Np, inner) * gates
    out = _mm(out, wo[...]) + bo[0]
    out_ref[0] = xs + out.reshape(Rt, Np, D)                # fused residual


def axial_attention_residual(x, p, heads, dim_head, row):
    B, N, _, D = x.shape
    # column attention == row attention on the transposed pair tensor; one
    # clean XLA transpose instead of an in-kernel N-way fold/unfold.
    xs = x if row else jnp.transpose(x, (0, 2, 1, 3))
    # edge bias is indexed identically for row & column modes: bias[p_i, p_j]
    # = Linear(x[b, p_i, p_j, :]); tiny D->heads projection done lane-dense in
    # XLA and broadcast into dots in-kernel.
    bias = jnp.einsum('bijd,dh->bhij', x.astype(_MM_DTYPE), p['wbias'],
                      preferred_element_type=jnp.float32)
    rt = _pick_div(N, 16)

    out = pl.pallas_call(
        functools.partial(_axial_attn_kernel, heads=heads, dim_head=dim_head),
        out_shape=jax.ShapeDtypeStruct((B, N, N, D), jnp.float32),
        grid=(B, N // rt),
        in_specs=[pl.BlockSpec((1, rt, N, D), lambda b, t: (b, t, 0, 0)),
                  pl.BlockSpec((1, heads, N, N), lambda b, t: (b, 0, 0, 0))]
                 + [_full_spec(w.shape) for w in
                    (p['ln_g'], p['ln_b'], p['wqkvg'], p['bg'],
                     p['wo'], p['bo'])],
        out_specs=pl.BlockSpec((1, rt, N, D), lambda b, t: (b, t, 0, 0)),
        compiler_params=_cparams(),
    )(xs, bias, p['ln_g'], p['ln_b'], p['wqkvg'], p['bg'], p['wo'], p['bo'])
    return out if row else jnp.transpose(out, (0, 2, 1, 3))


# ---------------------------------------------------------------------------
# forward pass + one-time parameter preparation
# ---------------------------------------------------------------------------
def prepare_params(params):
    """Fuse / cast weights once (hoisted out of the per-call wrappers)."""
    dt = _MM_DTYPE
    cast = lambda w: w.astype(dt)
    om = params['om']
    pom = dict(ln_g=om['ln_g'], ln_b=om['ln_b'],
               wlr=cast(jnp.concatenate([om['wl'], om['wr']], axis=1)),
               blr=jnp.concatenate([om['bl'], om['br']], axis=1),
               wo=cast(om['wo']), bo=om['bo'])

    def tri(t):
        return dict(ln_g=t['ln_g'], ln_b=t['ln_b'],
                    wp=cast(jnp.concatenate(
                        [t['wl'], t['wr'], t['wlg'], t['wrg'], t['wog']],
                        axis=1)),
                    bp=jnp.concatenate(
                        [t['bl'], t['br'], t['blg'], t['brg'], t['bog']],
                        axis=1),
                    on_g=t['on_g'], on_b=t['on_b'],
                    wo=cast(t['wo']), bo=t['bo'])

    def attn(a):
        return dict(ln_g=a['ln_g'], ln_b=a['ln_b'],
                    wqkvg=cast(jnp.concatenate(
                        [a['wq'], a['wkv'], a['wg']], axis=1)),
                    bg=a['bg'], wbias=cast(a['wbias']),
                    wo=cast(a['wo']), bo=a['bo'])

    return dict(om=pom,
                tri_out=tri(params['tri_out']),
                tri_in=tri(params['tri_in']),
                attn_row=attn(params['attn_row']),
                attn_col=attn(params['attn_col']))


def pairwise_attention_block(x, msa_repr, prepared, heads, dim_head):
    # TODO(synk): mask / msa_mask / tie_dim (global_column_attn) not modelled.
    x = outer_mean_residual(x, msa_repr, prepared['om'])
    x = triangle_multiply_residual(x, prepared['tri_out'], outgoing=True)
    x = triangle_multiply_residual(x, prepared['tri_in'], outgoing=False)
    x = axial_attention_residual(x, prepared['attn_row'], heads, dim_head, row=True)
    x = axial_attention_residual(x, prepared['attn_col'], heads, dim_head, row=False)
    return x


# ---------------------------------------------------------------------------
# pure-JAX reference (same operand-dtype / f32-accumulate matmul semantics)
# ---------------------------------------------------------------------------
def _cast(t):
    return t.astype(_MM_DTYPE)


def _ref_ln(x, g, b):
    mu = jnp.mean(x, axis=-1, keepdims=True)
    var = jnp.mean(jnp.square(x - mu), axis=-1, keepdims=True)
    return (x - mu) * jax.lax.rsqrt(var + EPS) * g + b


def _ref_lin(x, w, b=None):
    y = jnp.einsum('...k,kn->...n', _cast(x), _cast(w),
                   preferred_element_type=jnp.float32)
    return y if b is None else y + b[0]


def _ref_outer_mean(msa, p):
    M = msa.shape[1]
    xn = _ref_ln(msa, p['ln_g'][0], p['ln_b'][0])
    left = _ref_lin(xn, p['wl'], p['bl'])
    right = _ref_lin(xn, p['wr'], p['br'])
    outer = jnp.einsum('bmid,bmjd->bijd', _cast(left), _cast(right),
                       preferred_element_type=jnp.float32) * (1.0 / M)
    return _ref_lin(outer, p['wo'], p['bo'])


def _ref_triangle(x, p, outgoing):
    xn = _ref_ln(x, p['ln_g'][0], p['ln_b'][0])
    left = _ref_lin(xn, p['wl'], p['bl']) * jax.nn.sigmoid(
        _ref_lin(xn, p['wlg'], p['blg']))
    right = _ref_lin(xn, p['wr'], p['br']) * jax.nn.sigmoid(
        _ref_lin(xn, p['wrg'], p['brg']))
    og = jax.nn.sigmoid(_ref_lin(xn, p['wog'], p['bog']))
    eq = 'bikd,bjkd->bijd' if outgoing else 'bkjd,bkid->bijd'
    mixed = jnp.einsum(eq, _cast(left), _cast(right),
                       preferred_element_type=jnp.float32)
    mixed = _ref_ln(mixed, p['on_g'][0], p['on_b'][0]) * og
    return _ref_lin(mixed, p['wo'], p['bo'])


def _ref_axial(x, p, heads, dim_head, row):
    B = x.shape[0]
    inner = heads * dim_head
    edges = x
    seq = x if row else jnp.transpose(x, (0, 2, 1, 3))
    xn = _ref_ln(seq, p['ln_g'][0], p['ln_b'][0])
    q = _ref_lin(xn, p['wq']) * dim_head ** -0.5
    kv = _ref_lin(xn, p['wkv'])
    k, v = kv[..., :inner], kv[..., inner:]
    sp = lambda t: t.reshape(B, t.shape[1], t.shape[2], heads, dim_head)
    q, k, v = sp(q), sp(k), sp(v)
    dots = jnp.einsum('brihd,brjhd->brhij', _cast(q), _cast(k),
                      preferred_element_type=jnp.float32)
    bias = jnp.einsum('bijd,dh->bhij', _cast(edges), _cast(p['wbias']),
                      preferred_element_type=jnp.float32)
    dots = dots + bias[:, None]
    attn = jax.nn.softmax(dots, axis=-1)
    out = jnp.einsum('brhij,brjhd->brihd', _cast(attn), _cast(v),
                     preferred_element_type=jnp.float32)
    out = out.reshape(B, out.shape[1], out.shape[2], inner)
    out = out * jax.nn.sigmoid(_ref_lin(xn, p['wg'], p['bg']))
    out = _ref_lin(out, p['wo'], p['bo'])
    return out if row else jnp.transpose(out, (0, 2, 1, 3))


def _ref_block(x, msa, params, heads, dim_head):
    x = x + _ref_outer_mean(msa, params['om'])
    x = _ref_triangle(x, params['tri_out'], True) + x
    x = _ref_triangle(x, params['tri_in'], False) + x
    x = _ref_axial(x, params['attn_row'], heads, dim_head, True) + x
    x = _ref_axial(x, params['attn_col'], heads, dim_head, False) + x
    return x


# ---------------------------------------------------------------------------
# deterministic parameter init (synthetic — not a checkpoint load)
# ---------------------------------------------------------------------------
def init_params(key, dim, heads, dim_head, scale=0.05):
    inner = heads * dim_head
    keys = iter(jax.random.split(key, 64))

    def lin(din, dout):
        return jax.random.normal(next(keys), (din, dout), jnp.float32) * scale

    def bias(dout):
        return jax.random.normal(next(keys), (1, dout), jnp.float32) * scale

    ones = lambda d: jnp.ones((1, d), jnp.float32)
    zeros = lambda d: jnp.zeros((1, d), jnp.float32)

    om = dict(ln_g=ones(dim), ln_b=zeros(dim),
              wl=lin(dim, dim), bl=bias(dim),
              wr=lin(dim, dim), br=bias(dim),
              wo=lin(dim, dim), bo=bias(dim))

    def tri():
        return dict(ln_g=ones(dim), ln_b=zeros(dim),
                    wl=lin(dim, dim), bl=bias(dim),
                    wr=lin(dim, dim), br=bias(dim),
                    wlg=lin(dim, dim), blg=bias(dim),
                    wrg=lin(dim, dim), brg=bias(dim),
                    wog=lin(dim, dim), bog=bias(dim),
                    on_g=ones(dim), on_b=zeros(dim),
                    wo=lin(dim, dim), bo=bias(dim))

    def attn():
        return dict(ln_g=ones(dim), ln_b=zeros(dim),
                    wq=lin(dim, inner),
                    wkv=lin(dim, 2 * inner),
                    wbias=lin(dim, heads),
                    wg=lin(dim, inner), bg=bias(inner),
                    wo=lin(inner, dim), bo=bias(dim))

    return dict(om=om, tri_out=tri(), tri_in=tri(),
                attn_row=attn(), attn_col=attn())


# ---------------------------------------------------------------------------
if __name__ == "__main__":
    B, N, D = 2, 8, 32          # batch, pairwise seq_len, dim
    HEADS, DIM_HEAD = 2, 8
    M = 4                       # number of MSA rows

    key = jax.random.PRNGKey(0)
    kx, kmsa, kp = jax.random.split(key, 3)
    x = jax.random.normal(kx, (B, N, N, D), jnp.float32)
    msa_repr = jax.random.normal(kmsa, (B, M, N, D), jnp.float32)
    params = init_params(kp, D, HEADS, DIM_HEAD)
    prepared = prepare_params(params)

    out = pairwise_attention_block(x, msa_repr, prepared, HEADS, DIM_HEAD)
    out = jax.block_until_ready(out)

    ref = jax.block_until_ready(_ref_block(x, msa_repr, params, HEADS, DIM_HEAD))
    assert out.shape == (B, N, N, D), out.shape
    err = float(jnp.max(jnp.abs(out - ref)))
    assert err < 2e-2, f"max abs error vs reference: {err}"
    print("KERNEL_OK")
</pallas_src>

<mosaic_0001>
module attributes {stable_mosaic.version = 11 : i64} {
  func.func @_om_proj_kernel(%arg0: i32, %arg1: i32, %arg2: memref<1x32x32xf32, #tpu.memory_space<vmem>>, %arg3: memref<1x32xf32, #tpu.memory_space<vmem>>, %arg4: memref<1x32xf32, #tpu.memory_space<vmem>>, %arg5: memref<32x64xf32, #tpu.memory_space<vmem>>, %arg6: memref<1x64xf32, #tpu.memory_space<vmem>>, %arg7: memref<1x32x32xf32, #tpu.memory_space<vmem>>, %arg8: memref<1x32x32xf32, #tpu.memory_space<vmem>>) attributes {dimension_semantics = [#tpu.dimension_semantics<parallel>, #tpu.dimension_semantics<parallel>], iteration_bounds = array<i64: 2, 1>, scalar_prefetch = 0 : i64, scratch_operands = 0 : i64, tpu.core_type = #tpu.core_type<tc>, window_params = [{transform_indices = @transform_0, window_bounds = array<i64: 1, 32, 32>}, {pipeline_mode = #tpu.pipeline_mode<synchronous>, transform_indices = @transform_1, window_bounds = array<i64: 1, 32>}, {pipeline_mode = #tpu.pipeline_mode<synchronous>, transform_indices = @transform_2, window_bounds = array<i64: 1, 32>}, {pipeline_mode = #tpu.pipeline_mode<synchronous>, transform_indices = @transform_3, window_bounds = array<i64: 32, 64>}, {pipeline_mode = #tpu.pipeline_mode<synchronous>, transform_indices = @transform_4, window_bounds = array<i64: 1, 64>}, {transform_indices = @transform_5, window_bounds = array<i64: 1, 32, 32>}, {transform_indices = @transform_6, window_bounds = array<i64: 1, 32, 32>}]} {
    %c0 = arith.constant 0 : index
    %c0_0 = arith.constant 0 : index
    %c0_1 = arith.constant 0 : index
    %0 = vector.load %arg2[%c0, %c0_0, %c0_1] : memref<1x32x32xf32, #tpu.memory_space<vmem>>, vector<1x32x32xf32>
    %1 = vector.shape_cast %0 : vector<1x32x32xf32> to vector<32x32xf32>
    %c0_2 = arith.constant 0 : index
    %c0_3 = arith.constant 0 : index
    %2 = vector.load %arg3[%c0_2, %c0_3] : memref<1x32xf32, #tpu.memory_space<vmem>>, vector<1x32xf32>
    %3 = vector.shape_cast %2 : vector<1x32xf32> to vector<32xf32>
    %c0_4 = arith.constant 0 : index
    %c0_5 = arith.constant 0 : index
    %4 = vector.load %arg4[%c0_4, %c0_5] : memref<1x32xf32, #tpu.memory_space<vmem>>, vector<1x32xf32>
    %5 = vector.shape_cast %4 : vector<1x32xf32> to vector<32xf32>
    %cst = arith.constant dense<0.000000e+00> : vector<32xf32>
    %6 = vector.multi_reduction <add>, %1, %cst [1] : vector<32x32xf32> to vector<32xf32>
    %7 = vector.shape_cast %6 : vector<32xf32> to vector<32x1xf32>
    %cst_6 = arith.constant 3.200000e+01 : f32
    %8 = vector.broadcast %cst_6 : f32 to vector<32x1xf32>
    %9 = arith.divf %7, %8 : vector<32x1xf32>
    %10 = vector.broadcast %9 : vector<32x1xf32> to vector<32x32xf32>
    %11 = arith.subf %1, %10 : vector<32x32xf32>
    %12 = arith.mulf %11, %11 : vector<32x32xf32>
    %cst_7 = arith.constant dense<0.000000e+00> : vector<32xf32>
    %13 = vector.multi_reduction <add>, %12, %cst_7 [1] : vector<32x32xf32> to vector<32xf32>
    %14 = vector.shape_cast %13 : vector<32xf32> to vector<32x1xf32>
    %cst_8 = arith.constant 3.200000e+01 : f32
    %15 = vector.broadcast %cst_8 : f32 to vector<32x1xf32>
    %16 = arith.divf %14, %15 : vector<32x1xf32>
    %17 = vector.broadcast %9 : vector<32x1xf32> to vector<32x32xf32>
    %18 = arith.subf %1, %17 : vector<32x32xf32>
    %cst_9 = arith.constant 9.99999974E-6 : f32
    %19 = vector.broadcast %cst_9 : f32 to vector<32x1xf32>
    %20 = arith.addf %16, %19 : vector<32x1xf32>
    %21 = math.rsqrt %20 : vector<32x1xf32>
    %22 = vector.broadcast %21 : vector<32x1xf32> to vector<32x32xf32>
    %23 = arith.mulf %18, %22 : vector<32x32xf32>
    %24 = vector.shape_cast %3 : vector<32xf32> to vector<1x32xf32>
    %25 = vector.broadcast %24 : vector<1x32xf32> to vector<32x32xf32>
    %26 = arith.mulf %23, %25 : vector<32x32xf32>
    %27 = vector.shape_cast %5 : vector<32xf32> to vector<1x32xf32>
    %28 = vector.broadcast %27 : vector<1x32xf32> to vector<32x32xf32>
    %29 = arith.addf %26, %28 : vector<32x32xf32>
    %c0_10 = arith.constant 0 : index
    %c0_11 = arith.constant 0 : index
    %30 = vector.load %arg5[%c0_10, %c0_11] : memref<32x64xf32, #tpu.memory_space<vmem>>, vector<32x64xf32>
    %cst_12 = arith.constant dense<0.000000e+00> : vector<32x64xf32>
    %31 = tpu.matmul %29, %30, %cst_12 {dimension_numbers = #tpu.dot_dimension_numbers<[1], [0], [0], [1], [0, 0, 1, 1], [], []>} : vector<32x32xf32>, vector<32x64xf32>, vector<32x64xf32> -> vector<32x64xf32>
    %c0_13 = arith.constant 0 : index
    %c0_14 = arith.constant 0 : index
    %32 = vector.load %arg6[%c0_13, %c0_14] : memref<1x64xf32, #tpu.memory_space<vmem>>, vector<1x64xf32>
    %33 = vector.shape_cast %32 : vector<1x64xf32> to vector<64xf32>
    %34 = vector.shape_cast %33 : vector<64xf32> to vector<1x64xf32>
    %35 = vector.broadcast %34 : vector<1x64xf32> to vector<32x64xf32>
    %36 = arith.addf %31, %35 : vector<32x64xf32>
    %37 = vector.extract_strided_slice %36 {offsets = [0, 0], sizes = [32, 32], strides = [1, 1]} : vector<32x64xf32> to vector<32x32xf32>
    %38 = tpu.transpose %37, [1, 0] : vector<32x32xf32> -> vector<32x32xf32>
    %c0_15 = arith.constant 0 : index
    %c0_16 = arith.constant 0 : index
    %c0_17 = arith.constant 0 : index
    %39 = vector.load %arg7[%c0_15, %c0_16, %c0_17] : memref<1x32x32xf32, #tpu.memory_space<vmem>>, vector<1x32x32xf32>
    %40 = vector.shape_cast %39 : vector<1x32x32xf32> to vector<32x32xf32>
    %41 = vector.shape_cast %38 : vector<32x32xf32> to vector<1x32x32xf32>
    tpu.vector_store %arg7[%c0_15, %c0_16, %c0_17], %41 {strides = array<i32>} : memref<1x32x32xf32, #tpu.memory_space<vmem>>, vector<1x32x32xf32>,
    %42 = vector.extract_strided_slice %36 {offsets = [0, 32], sizes = [32, 32], strides = [1, 1]} : vector<32x64xf32> to vector<32x32xf32>
    %43 = tpu.transpose %42, [1, 0] : vector<32x32xf32> -> vector<32x32xf32>
    %c0_18 = arith.constant 0 : index
    %c0_19 = arith.constant 0 : index
    %c0_20 = arith.constant 0 : index
    %44 = vector.load %arg8[%c0_18, %c0_19, %c0_20] : memref<1x32x32xf32, #tpu.memory_space<vmem>>, vector<1x32x32xf32>
    %45 = vector.shape_cast %44 : vector<1x32x32xf32> to vector<32x32xf32>
    %46 = vector.shape_cast %43 : vector<32x32xf32> to vector<1x32x32xf32>
    tpu.vector_store %arg8[%c0_18, %c0_19, %c0_20], %46 {strides = array<i32>} : memref<1x32x32xf32, #tpu.memory_space<vmem>>, vector<1x32x32xf32>,
    return
  }
  func.func @transform_0(%arg0: i32, %arg1: i32) -> (i32, i32, i32) {
    %c0_i32 = arith.constant 0 : i32
    %c0_i32_0 = arith.constant 0 : i32
    return %arg0, %arg1, %c0_i32 : i32, i32, i32
  }
  func.func @transform_1(%arg0: i32, %arg1: i32) -> (i32, i32) {
    %c0_i32 = arith.constant 0 : i32
    %c0_i32_0 = arith.constant 0 : i32
    %c0_i32_1 = arith.constant 0 : i32
    return %c0_i32, %c0_i32_0 : i32, i32
  }
  func.func @transform_2(%arg0: i32, %arg1: i32) -> (i32, i32) {
    %c0_i32 = arith.constant 0 : i32
    %c0_i32_0 = arith.constant 0 : i32
    %c0_i32_1 = arith.constant 0 : i32
    return %c0_i32, %c0_i32_0 : i32, i32
  }
  func.func @transform_3(%arg0: i32, %arg1: i32) -> (i32, i32) {
    %c0_i32 = arith.constant 0 : i32
    %c0_i32_0 = arith.constant 0 : i32
    %c0_i32_1 = arith.constant 0 : i32
    return %c0_i32, %c0_i32_0 : i32, i32
  }
  func.func @transform_4(%arg0: i32, %arg1: i32) -> (i32, i32) {
    %c0_i32 = arith.constant 0 : i32
    %c0_i32_0 = arith.constant 0 : i32
    %c0_i32_1 = arith.constant 0 : i32
    return %c0_i32, %c0_i32_0 : i32, i32
  }
  func.func @transform_5(%arg0: i32, %arg1: i32) -> (i32, i32, i32) {
    %c0_i32 = arith.constant 0 : i32
    %c0_i32_0 = arith.constant 0 : i32
    return %arg0, %c0_i32, %arg1 : i32, i32, i32
  }
  func.func @transform_6(%arg0: i32, %arg1: i32) -> (i32, i32, i32) {
    %c0_i32 = arith.constant 0 : i32
    %c0_i32_0 = arith.constant 0 : i32
    return %arg0, %c0_i32, %arg1 : i32, i32, i32
  }
}

</mosaic_0001>

<llo_original>
// kernel: tpu_custom_call.1
$region0: #{tpu_custom_call.1}
  #allocation0 [shape = 'u32[]', space=smem, size = 0x4, offset = 0x4, fixed_abs, tag = 'smem constant byte address 0x4 - core index']
  #allocation1 [shape = 'u32[144,128]{1,0:T(1,128)}', space=vmem, size = 0x12000, scoped, tag = 'internal scratch']
  %s0 = inlined_call_operand.hbm [shape: f32[2,32,32], index: 0, kind: input, shape index: {}]
  %s1 = inlined_call_operand.vmem [shape: f32[1,32], index: 1, kind: input, shape index: {}]
  %s2 = inlined_call_operand.vmem [shape: f32[1,32], index: 2, kind: input, shape index: {}]
  %s3 = inlined_call_operand.hbm [shape: f32[32,64], index: 3, kind: input, shape index: {}]
  %s4 = inlined_call_operand.vmem [shape: f32[1,64], index: 4, kind: input, shape index: {}]
  %s5 = inlined_call_operand.hbm [shape: f32[2,32,32], index: 5, kind: output, shape index: {0}]
  %s6 = inlined_call_operand.hbm [shape: f32[2,32,32], index: 6, kind: output, shape index: {1}]
  %7 = xla_tuple %s5, %s6
  %s8 = sld [smem:[#allocation0]]
  $region69: #{tpu_custom_call.1} parent=0
    _
  %s10 = ssub.s32 1, %s8
  %s11 = scalar_select 0, %s10, %s8
  $region1: #{tpu_custom_call.1} parent=0
    #allocation2 [shape = 'u8[32768]{0}', space=vmem, size = 0x8000, scoped, tag = 'input window, operand 0']
    #allocation3 [shape = 's32[2]{0}', space=sflag, size = 0x8, scoped, tag = 'scoped memory for tpu_custom_call.1']
    #allocation4 [shape = 's32[2]{0}', space=sflag, size = 0x8, scoped, tag = 'scoped memory for tpu_custom_call.1']
    #allocation5 [shape = 'u8[16384]{0}', space=vmem, size = 0x4000, scoped, tag = 'input window, operand 3, single buffered']
    #allocation6 [shape = 's32[1]{0}', space=sflag, size = 0x4, scoped, tag = 'scoped memory for tpu_custom_call.1']
    #allocation7 [shape = 'u8[32768]{0}', space=vmem, size = 0x8000, scoped, tag = 'output window, operand 0']
    #allocation8 [shape = 'u8[32768]{0}', space=vmem, size = 0x8000, scoped, tag = 'output window, operand 1']
    #allocation9 [shape = 's32[2]{0}', space=sflag, size = 0x8, scoped, tag = 'scoped memory for tpu_custom_call.1']
    %12 = vsyncpa [#allocation3], 0
    %s13 = scalar_lea.sflag [#allocation3], 1
    %14 = vsyncpa %s13, 0
    %15 = vsyncpa [#allocation6], 0
    %16 = vsyncpa [#allocation4], 0
    %s17 = scalar_lea.sflag [#allocation4], 1
    %18 = vsyncpa %s17, 0
    %19 = vsyncpa [#allocation9], 0
    %s20 = scalar_lea.sflag [#allocation9], 1
    %21 = vsyncpa %s20, 0
    loop: start=0, step=1, limit=4
    $region2: #{tpu_custom_call.1} parent=1 // loop_pre_header
      _
    $region3: #{tpu_custom_call.1} parent=1 // loop_header
      %s23 = sphi 0, %s27
      %p24 = scmp.ge.s32.totalorder %s23, 4
      %s30 = sphi 0, %s42
      %s31 = sphi 0, %s38
      %s32 = sphi 0, %s30
      %s33 = sphi 0, %s31
      %s34 = sphi 0, %s32
      %s35 = sphi 0, %s33
      %s47 = sphi 0, %s49
      %s50 = sphi 0, %s47
      %s51 = sphi 0, %s50
      %s67 = sphi 0, %s51
      %s71 = sphi 0, %s71
      %s73 = sphi 0, %s71
      %s74 = sphi 0, %s73
      %s88 = sphi 0, %s74
      %s92 = sphi 0, %s92
      %s94 = sphi 0, %s92
      %s95 = sphi 0, %s94
      %s109 = sphi 0, %s95
      %s113 = sphi 0, %s113
      %s115 = sphi 0, %s113
      %s116 = sphi 0, %s115
      %s130 = sphi 0, %s116
      %s134 = sphi 0, %s134
      %s136 = sphi 0, %s134
      %s137 = sphi 0, %s136
      %s151 = sphi 0, %s137
      %s159 = sphi 0, %s161
      %s162 = sphi 0, %s159
      %s163 = sphi 0, %s162
      %s179 = sphi 0, %s163
      %s187 = sphi 0, %s189
      %s190 = sphi 0, %s187
      %s191 = sphi 0, %s190
      %s207 = sphi 0, %s191
    $region4: #{tpu_custom_call.1} parent=1 // loop_header_branch
      %26 = sbr.rel (%p24) target = $region8
    $region5: #{tpu_custom_call.1} parent=1 // loop_body
      %s28 = ssub.s32 %s23, 1
      %s29 = ssub.s32 %s23, 2
      %s36 = sadd.s32 1, %s31
      %p37 = scmp.ge.s32.totalorder %s36, 1
      %s38 = scalar_select %p37, 0, %s36
      %s39 = sadd.s32 1, %s30
      %s40 = scalar_select %p37, %s39, %s30
      %p41 = scmp.ge.s32.totalorder %s40, 2
      %s42 = scalar_select %p41, 0, %s40
      %s43 = ssub.s32 %s30, %s42
      %s44 = ssub.s32 %s31, %s38
      %s45 = sor.u32 %s43, %s44
      %p46 = scmp.eq.s32.totalorder %s45, 0
      %s48 = sadd.s32 %s47, 1
      %s49 = scalar_select %p46, %s47, %s48
      %p52 = pneg %p46
      %p53 = scmp.eq.s32.totalorder %s23, 1
      %p54 = por %p52, %p53
      %p55 = scmp.ne.s32.totalorder %s47, %s50
      %p56 = scmp.eq.s32.totalorder %s23, 0
      %p57 = por %p55, %p56
      %p58 = scmp.ne.s32.totalorder %s47, %s50
      %p59 = scmp.eq.s32.totalorder %s28, 1
      %p60 = por %p58, %p59
      %p61 = scmp.ne.s32.totalorder %s50, %s51
      %p62 = scmp.eq.s32.totalorder %s28, 0
      %p63 = por %p61, %p62
      %p64 = scmp.ne.s32.totalorder %s50, %s51
      %p65 = scmp.eq.s32.totalorder %s29, 1
      %p66 = por %p64, %p65
      %p68 = scmp.ne.s32.totalorder %s51, %s67
      %p69 = scmp.eq.s32.totalorder %s29, 0
      %p70 = por %p68, %p69
      %s72 = sadd.s32 %s71, 1
      %p75 = scmp.eq.s32.totalorder %s23, 1
      %p76 = scmp.ne.s32.totalorder %s71, %s73
      %p77 = scmp.eq.s32.totalorder %s23, 0
      %p78 = por %p76, %p77
      %p79 = scmp.ne.s32.totalorder %s71, %s73
      %p80 = scmp.eq.s32.totalorder %s28, 1
      %p81 = por %p79, %p80
      %p82 = scmp.ne.s32.totalorder %s73, %s74
      %p83 = scmp.eq.s32.totalorder %s28, 0
      %p84 = por %p82, %p83
      %p85 = scmp.ne.s32.totalorder %s73, %s74
      %p86 = scmp.eq.s32.totalorder %s29, 1
      %p87 = por %p85, %p86
      %p89 = scmp.ne.s32.totalorder %s74, %s88
      %p90 = scmp.eq.s32.totalorder %s29, 0
      %p91 = por %p89, %p90
      %s93 = sadd.s32 %s92, 1
      %p96 = scmp.eq.s32.totalorder %s23, 1
      %p97 = scmp.ne.s32.totalorder %s92, %s94
      %p98 = scmp.eq.s32.totalorder %s23, 0
      %p99 = por %p97, %p98
      %p100 = scmp.ne.s32.totalorder %s92, %s94
      %p101 = scmp.eq.s32.totalorder %s28, 1
      %p102 = por %p100, %p101
      %p103 = scmp.ne.s32.totalorder %s94, %s95
      %p104 = scmp.eq.s32.totalorder %s28, 0
      %p105 = por %p103, %p104
      %p106 = scmp.ne.s32.totalorder %s94, %s95
      %p107 = scmp.eq.s32.totalorder %s29, 1
      %p108 = por %p106, %p107
      %p110 = scmp.ne.s32.totalorder %s95, %s109
      %p111 = scmp.eq.s32.totalorder %s29, 0
      %p112 = por %p110, %p111
      %s114 = sadd.s32 %s113, 1
      %p117 = scmp.eq.s32.totalorder %s23, 1
      %p118 = scmp.ne.s32.totalorder %s113, %s115
      %p119 = scmp.eq.s32.totalorder %s23, 0
      %p120 = por %p118, %p119
      %p121 = scmp.ne.s32.totalorder %s113, %s115
      %p122 = scmp.eq.s32.totalorder %s28, 1
      %p123 = por %p121, %p122
      %p124 = scmp.ne.s32.totalorder %s115, %s116
      %p125 = scmp.eq.s32.totalorder %s28, 0
      %p126 = por %p124, %p125
      %p127 = scmp.ne.s32.totalorder %s115, %s116
      %p128 = scmp.eq.s32.totalorder %s29, 1
      %p129 = por %p127, %p128
      %p131 = scmp.ne.s32.totalorder %s116, %s130
      %p132 = scmp.eq.s32.totalorder %s29, 0
      %p133 = por %p131, %p132
      %s135 = sadd.s32 %s134, 1
      %p138 = scmp.eq.s32.totalorder %s23, 1
      %p139 = scmp.ne.s32.totalorder %s134, %s136
      %p140 = scmp.eq.s32.totalorder %s23, 0
      %p141 = por %p139, %p140
      %p142 = scmp.ne.s32.totalorder %s134, %s136
      %p143 = scmp.eq.s32.totalorder %s28, 1
      %p144 = por %p142, %p143
      %p145 = scmp.ne.s32.totalorder %s136, %s137
      %p146 = scmp.eq.s32.totalorder %s28, 0
      %p147 = por %p145, %p146
      %p148 = scmp.ne.s32.totalorder %s136, %s137
      %p149 = scmp.eq.s32.totalorder %s29, 1
      %p150 = por %p148, %p149
      %p152 = scmp.ne.s32.totalorder %s137, %s151
      %p153 = scmp.eq.s32.totalorder %s29, 0
      %p154 = por %p152, %p153
      %s155 = ssub.s32 %s30, %s42
      %s156 = ssub.s32 %s31, %s38
      %s157 = sor.u32 %s155, %s156
      %p158 = scmp.eq.s32.totalorder %s157, 0
      %s160 = sadd.s32 %s159, 1
      %s161 = scalar_select %p158, %s159, %s160
      %p164 = pneg %p158
      %p165 = scmp.eq.s32.totalorder %s23, 1
      %p166 = por %p164, %p165
      %p167 = scmp.ne.s32.totalorder %s159, %s162
      %p168 = scmp.eq.s32.totalorder %s23, 0
      %p169 = por %p167, %p168
      %p170 = scmp.ne.s32.totalorder %s159, %s162
      %p171 = scmp.eq.s32.totalorder %s28, 1
      %p172 = por %p170, %p171
      %p173 = scmp.ne.s32.totalorder %s162, %s163
      %p174 = scmp.eq.s32.totalorder %s28, 0
      %p175 = por %p173, %p174
      %p176 = scmp.ne.s32.totalorder %s162, %s163
      %p177 = scmp.eq.s32.totalorder %s29, 1
      %p178 = por %p176, %p177
      %p180 = scmp.ne.s32.totalorder %s163, %s179
      %p181 = scmp.eq.s32.totalorder %s29, 0
      %p182 = por %p180, %p181
      %s183 = ssub.s32 %s30, %s42
      %s184 = ssub.s32 %s31, %s38
      %s185 = sor.u32 %s183, %s184
      %p186 = scmp.eq.s32.totalorder %s185, 0
      %s188 = sadd.s32 %s187, 1
      %s189 = scalar_select %p186, %s187, %s188
      %p192 = pneg %p186
      %p193 = scmp.eq.s32.totalorder %s23, 1
      %p194 = por %p192, %p193
      %p195 = scmp.ne.s32.totalorder %s187, %s190
      %p196 = scmp.eq.s32.totalorder %s23, 0
      %p197 = por %p195, %p196
      %p198 = scmp.ne.s32.totalorder %s187, %s190
      %p199 = scmp.eq.s32.totalorder %s28, 1
      %p200 = por %p198, %p199
      %p201 = scmp.ne.s32.totalorder %s190, %s191
      %p202 = scmp.eq.s32.totalorder %s28, 0
      %p203 = por %p201, %p202
      %p204 = scmp.ne.s32.totalorder %s190, %s191
      %p205 = scmp.eq.s32.totalorder %s29, 1
      %p206 = por %p204, %p205
      %p208 = scmp.ne.s32.totalorder %s191, %s207
      %p209 = scmp.eq.s32.totalorder %s29, 0
      %p210 = por %p208, %p209
      %p211 = scmp.le.s32.totalorder 1, %s23
      %p212 = scmp.lt.s32.totalorder %s23, 3
      %p213 = pnand %p211, %p212
      %p214 = pneg %p213
      // Predicated region
      $region9: #{tpu_custom_call.1} parent=5 // pred_check
        _
      $region10: #{tpu_custom_call.1} parent=5 // pred_check_branch
        %216 = sbr.rel (%p213) target = $region12
      $region11: #{tpu_custom_call.1} parent=5 // pred_region
        %s217 = ssub.s32 %s23, 1
        // Predicated region
        $region13: #{tpu_custom_call.1} parent=11 // pred_check
          %p218 = pneg %p84
        $region14: #{tpu_custom_call.1} parent=11 // pred_check_branch
          %220 = sbr.rel (%p218) target = $region16
        $region15: #{tpu_custom_call.1} parent=11 // pred_region
          _
        $region16: #{tpu_custom_call.1} parent=11 // pred_fallthru
          _
        // Predicated region
        $region17: #{tpu_custom_call.1} parent=11 // pred_check
          %p221 = pneg %p105
        $region18: #{tpu_custom_call.1} parent=11 // pred_check_branch
          %223 = sbr.rel (%p221) target = $region20
        $region19: #{tpu_custom_call.1} parent=11 // pred_region
          _
        $region20: #{tpu_custom_call.1} parent=11 // pred_fallthru
          _
        // Predicated region
        $region21: #{tpu_custom_call.1} parent=11 // pred_check
          %p224 = pneg %p126
        $region22: #{tpu_custom_call.1} parent=11 // pred_check_branch
          %226 = sbr.rel (%p224) target = $region24
        $region23: #{tpu_custom_call.1} parent=11 // pred_region
          %s228 = ssub.s32 512, 512
          %229 = vsyncadd [#allocation6], %s228
          %s230 = sshll.u32 [#allocation5], 4
          %s231 = int_to_ptr.vmem [resolvable:$true] %s230
          %236 = dma.hbm_to_vmem [thread:$0]  %s3, 512, %s231, [#allocation6], 128, 128, 8
        $region24: #{tpu_custom_call.1} parent=11 // pred_fallthru
          _
        // Predicated region
        $region25: #{tpu_custom_call.1} parent=11 // pred_check
          %p237 = pneg %p147
        $region26: #{tpu_custom_call.1} parent=11 // pred_check_branch
          %239 = sbr.rel (%p237) target = $region28
        $region27: #{tpu_custom_call.1} parent=11 // pred_region
          _
        $region28: #{tpu_custom_call.1} parent=11 // pred_fallthru
          _
      $region12: #{tpu_custom_call.1} parent=5 // pred_fallthru
        _
      %p240 = scmp.lt.s32.totalorder %s23, 2
      // Predicated region
      $region29: #{tpu_custom_call.1} parent=5 // pred_check
        %p241 = pneg %p240
      $region30: #{tpu_custom_call.1} parent=5 // pred_check_branch
        %243 = sbr.rel (%p241) target = $region32
      $region31: #{tpu_custom_call.1} parent=5 // pred_region
        // Predicated region
        $region33: #{tpu_custom_call.1} parent=31 // pred_check
          %p244 = pneg %p57
        $region34: #{tpu_custom_call.1} parent=31 // pred_check_branch
          %246 = sbr.rel (%p244) target = $region36
        $region35: #{tpu_custom_call.1} parent=31 // pred_region
          %s247 = sand.u32 %s47, 1
          %s248 = scalar_lea.sflag [#allocation3], %s247
          %s249 = sand.u32 %s47, 1
          %s250 = smul.addr %s249, 32
          %s251 = scalar_lea.vmem [#allocation2], %s250
          %s252 = smul.u32 4, %s31
          %s254 = ssub.s32 512, 512
          %255 = vsyncadd %s248, %s254
          %s256 = smul.addr %s30, 4
          %s257 = sadd.s32 %s252, %s256
          %s258 = smul.addr %s257, 128
          %s259 = scalar_lea.hbm %s0, %s258
          %s260 = sshll.u32 %s251, 4
          %s261 = int_to_ptr.vmem [resolvable:$true] %s260
          %266 = dma.hbm_to_vmem [thread:$0]  %s259, 512, %s261, %s248, 128, 128, 8
        $region36: #{tpu_custom_call.1} parent=31 // pred_fallthru
          _
      $region32: #{tpu_custom_call.1} parent=5 // pred_fallthru
        _
      %p267 = scmp.le.s32.totalorder 1, %s23
      %p268 = scmp.lt.s32.totalorder %s23, 3
      %p269 = pnand %p267, %p268
      %p270 = pneg %p269
      // Predicated region
      $region37: #{tpu_custom_call.1} parent=5 // pred_check
        _
      $region38: #{tpu_custom_call.1} parent=5 // pred_check_branch
        %272 = sbr.rel (%p269) target = $region40
      $region39: #{tpu_custom_call.1} parent=5 // pred_region
        %s273 = ssub.s32 %s23, 1
        %s274 = sand.u32 %s50, 1
        %s275 = scalar_lea.sflag [#allocation3], %s274
        %s276 = sand.u32 %s50, 1
        %s277 = smul.addr %s276, 32
        %s278 = scalar_lea.vmem [#allocation2], %s277
        // Predicated region
        $region41: #{tpu_custom_call.1} parent=39 // pred_check
          %p279 = pneg %p63
        $region42: #{tpu_custom_call.1} parent=39 // pred_check_branch
          %281 = sbr.rel (%p279) target = $region44
        $region43: #{tpu_custom_call.1} parent=39 // pred_region
          %282 = dma.done %s275, 512
        $region44: #{tpu_custom_call.1} parent=39 // pred_fallthru
          _
        // Predicated region
        $region45: #{tpu_custom_call.1} parent=39 // pred_check
          %p283 = pneg %p126
        $region46: #{tpu_custom_call.1} parent=39 // pred_check_branch
          %285 = sbr.rel (%p283) target = $region48
        $region47: #{tpu_custom_call.1} parent=39 // pred_region
          %286 = dma.done [#allocation6], 512
        $region48: #{tpu_custom_call.1} parent=39 // pred_fallthru
          _
        %s287 = sand.u32 %s50, 1
        %s288 = scalar_lea.sflag [#allocation3], %s287
        %s289 = sand.u32 %s50, 1
        %s290 = smul.addr %s289, 32
        %s291 = scalar_lea.vmem [#allocation2], %s290
        %p292 = pneg %p63
        %p293 = pneg %p60
        %p294 = pneg %p84
        %p295 = pneg %p81
        %p296 = pneg %p105
        %p297 = pneg %p102
        %p298 = pneg %p126
        %p299 = pneg %p123
        %p300 = pneg %p147
        %p301 = pneg %p144
        %p302 = pneg %p175
        %p303 = pneg %p172
        %s304 = sand.u32 %s162, 1
        %s305 = scalar_lea.sflag [#allocation4], %s304
        %s306 = sand.u32 %s162, 1
        %s307 = smul.addr %s306, 32
        %s308 = scalar_lea.vmem [#allocation7], %s307
        %p309 = pneg %p203
        %p310 = pneg %p200
        %s311 = sand.u32 %s190, 1
        %s312 = scalar_lea.sflag [#allocation9], %s311
        %s313 = sand.u32 %s190, 1
        %s314 = smul.addr %s313, 32
        %s315 = scalar_lea.vmem [#allocation8], %s314
        %s316 = smul.u32 4, %s33
        %v317 = vld [vmem:[%s278] sm:$0xff]
        %v318 = vld [vmem:[%s278 + $0x8] sm:$0xff]
        %v319 = vld [vmem:[%s278 + $0x10] sm:$0xff]
        %v320 = vld [vmem:[%s278 + $0x18] sm:$0xff]
        %v321 = vld [vmem:[%s1] sm:$0x1]
        %v322 = vld [vmem:[%s2] sm:$0x1]
        %vm323 = vcmask 261120
        %v324 = vsel %vm323, %v317, 0.0
        %325 = vadd.xlane.f32.xlu0 %v324
        %v326 = vpop.xlane.xlu0 %325
        %v327 = vsel %vm323, %v318, 0.0
        %328 = vadd.xlane.f32.xlu0 %v327
        %v329 = vpop.xlane.xlu0 %328
        %v330 = vsel %vm323, %v319, 0.0
        %331 = vadd.xlane.f32.xlu0 %v330
        %v332 = vpop.xlane.xlu0 %331
        %v333 = vsel %vm323, %v320, 0.0
        %334 = vadd.xlane.f32.xlu0 %v333
        %v335 = vpop.xlane.xlu0 %334
        %v336 = vrcp.pop 32.0
        %v337 = vmul.f32 %v326, %v336
        %v338 = vmul.f32 %v329, %v336
        %v339 = vmul.f32 %v332, %v336
        %v340 = vmul.f32 %v335, %v336
        %v341 = vsub.f32 %v317, %v337
        %v342 = vsub.f32 %v318, %v338
        %v343 = vsub.f32 %v319, %v339
        %v344 = vsub.f32 %v320, %v340
        %v345 = vmul.f32 %v341, %v341
        %v346 = vmul.f32 %v342, %v342
        %v347 = vmul.f32 %v343, %v343
        %v348 = vmul.f32 %v344, %v344
        %v349 = vsel %vm323, %v345, 0.0
        %350 = vadd.xlane.f32.xlu0 %v349
        %v351 = vpop.xlane.xlu0 %350
        %v352 = vsel %vm323, %v346, 0.0
        %353 = vadd.xlane.f32.xlu0 %v352
        %v354 = vpop.xlane.xlu0 %353
        %v355 = vsel %vm323, %v347, 0.0
        %356 = vadd.xlane.f32.xlu0 %v355
        %v357 = vpop.xlane.xlu0 %356
        %v358 = vsel %vm323, %v348, 0.0
        %359 = vadd.xlane.f32.xlu0 %v358
        %v360 = vpop.xlane.xlu0 %359
        %v361 = vmul.f32 %v351, %v336
        %v362 = vmul.f32 %v354, %v336
        %v363 = vmul.f32 %v357, %v336
        %v364 = vmul.f32 %v360, %v336
        %v365 = vadd.f32 %v361, 1e-05
        %v366 = vadd.f32 %v362, 1e-05
        %v367 = vadd.f32 %v363, 1e-05
        %v368 = vadd.f32 %v364, 1e-05
        %v369 = vrsqrt.pop %v365
        %v370 = vrsqrt.pop %v366
        %v371 = vrsqrt.pop %v367
        %v372 = vrsqrt.pop %v368
        %v373 = vmul.f32 %v341, %v369
        %v374 = vmul.f32 %v342, %v370
        %v375 = vmul.f32 %v343, %v371
        %v376 = vmul.f32 %v344, %v372
        %v378 = vlaneseq
        %v379 = vshrl.u32 %v378, 7
        %v380 = vsub.s32 0, %v379
        %v381 = vrot.slane %v321, %v380
        %v383 = vmul.f32 %v373, %v381
        %v384 = vmul.f32 %v374, %v381
        %v385 = vmul.f32 %v375, %v381
        %v386 = vmul.f32 %v376, %v381
        %v388 = vlaneseq
        %v389 = vshrl.u32 %v388, 7
        %v390 = vsub.s32 0, %v389
        %v391 = vrot.slane %v322, %v390
        %v393 = vadd.f32 %v383, %v391
        %v394 = vadd.f32 %v384, %v391
        %v395 = vadd.f32 %v385, %v391
        %v396 = vadd.f32 %v386, %v391
        %v397 = vld [vmem:[#allocation5] sm:$0xff]
        %v398 = vld [vmem:[#allocation5 + $0x8] sm:$0xff]
        %v399 = vld [vmem:[#allocation5 + $0x10] sm:$0xff]
        %v400 = vld [vmem:[#allocation5 + $0x18] sm:$0xff]
        %v401 = vld [vmem:[%s4] sm:$0x1]
        %v403 = vlaneseq
        %v404 = vshrl.u32 %v403, 7
        %v405 = vsub.s32 0, %v404
        %v406 = vrot.slane %v401, %v405
        %v409 = vsel %vm323, %v393, 0
        %v412 = vsel %vm323, %v394, 0
        %v415 = vsel %vm323, %v395, 0
        %v418 = vsel %vm323, %v396, 0
        %420 = vmatprep.subr.mxu0 0.0
        %421 = vmatpush1.msra.mxu0 %v397
        %422 = vmatprep.subr.mxu0 0.0
        %423 = vmatpush1.msra.mxu0 %v398
        %424 = vmatprep.subr.mxu0 0.0
        %425 = vmatpush1.msra.mxu0 %v399
        %426 = vmatprep.subr.mxu0 0.0
        %427 = vmatpush1.msra.mxu0 %v400
        %428 = vmatprep.subr.mxu0 0.0
        %429 = vmatpush1.msra.mxu0 0.0
        %430 = vmatprep.subr.mxu0 0.0
        %431 = vmatpush1.msra.mxu0 0.0
        %432 = vmatprep.subr.mxu0 0.0
        %433 = vmatpush1.msra.mxu0 0.0
        %434 = vmatprep.subr.mxu0 0.0
        %435 = vmatpush1.msra.mxu0 0.0
        %436 = vmatprep.subr.mxu0 0.0
        %437 = vmatpush1.msra.mxu0 0.0
        %438 = vmatprep.subr.mxu0 0.0
        %439 = vmatpush1.msra.mxu0 0.0
        %440 = vmatprep.subr.mxu0 0.0
        %441 = vmatpush1.msra.mxu0 0.0
        %442 = vmatprep.subr.mxu0 0.0
        %443 = vmatpush1.msra.mxu0 0.0
        %444 = vmatprep.subr.mxu0 0.0
        %445 = vmatpush1.msra.mxu0 0.0
        %446 = vmatprep.subr.mxu0 0.0
        %447 = vmatpush1.msra.mxu0 0.0
        %448 = vmatprep.subr.mxu0 0.0
        %449 = vmatpush1.msra.mxu0 0.0
        %450 = vmatprep.subr.mxu0 0.0
        %451 = vmatpush1.msra.mxu0 0.0
        %452 = vmatprep.subr.mxu0 0.0
        %453 = vmatpush1.msra.mxu0 0.0
        %454 = vmatprep.subr.mxu0 0.0
        %455 = vmatpush1.msra.mxu0 0.0
        %456 = vmatprep.subr.mxu0 0.0
        %457 = vmatpush1.msra.mxu0 0.0
        %458 = vmatprep.subr.mxu0 0.0
        %459 = vmatpush1.msra.mxu0 0.0
        %460 = vmatprep.subr.mxu0 0.0
        %461 = vmatpush1.msra.mxu0 0.0
        %462 = vmatprep.subr.mxu0 0.0
        %463 = vmatpush1.msra.mxu0 0.0
        %464 = vmatprep.subr.mxu0 0.0
        %465 = vmatpush1.msra.mxu0 0.0
        %466 = vmatprep.subr.mxu0 0.0
        %467 = vmatpush1.msra.mxu0 0.0
        %468 = vmatprep.subr.mxu0 0.0
        %469 = vmatpush1.msra.mxu0 0.0
        %470 = vmatprep.subr.mxu0 0.0
        %471 = vmatpush1.msra.mxu0 0.0
        %472 = vmatprep.subr.mxu0 0.0
        %473 = vmatpush1.msra.mxu0 0.0
        %474 = vmatprep.subr.mxu0 0.0
        %475 = vmatpush1.msra.mxu0 0.0
        %476 = vmatprep.subr.mxu0 0.0
        %477 = vmatpush1.msra.mxu0 0.0
        %478 = vmatprep.subr.mxu0 0.0
        %479 = vmatpush1.msra.mxu0 0.0
        %480 = vmatprep.subr.mxu0 0.0
        %481 = vmatpush1.msra.mxu0 0.0
        %482 = vmatprep.subr.mxu0 0.0
        %483 = vmatpush1.msra.mxu0 0.0
        %484 = vmatprep.mubr.f32.mxu0 0.0
        %485 = vmatmul.mubr.f32.gmra.mrb[0].mxu0 %v409
        %v486 = vpop.f32.mrb[0].mxu0
        %v487 = vadd.f32 %v406, %v486
        %v488 = vpop.f32.mrb[0].mxu0
        %489 = vmatprep.mubr.f32.mxu0 0.0
        %490 = vmatmul.mubr.f32.gmra.mrb[0].mxu0 %v412
        %v491 = vpop.f32.mrb[0].mxu0
        %v492 = vadd.f32 %v406, %v491
        %v493 = vpop.f32.mrb[0].mxu0
        %494 = vmatprep.mubr.f32.mxu0 0.0
        %495 = vmatmul.mubr.f32.gmra.mrb[0].mxu0 %v415
        %v496 = vpop.f32.mrb[0].mxu0
        %v497 = vadd.f32 %v406, %v496
        %v498 = vpop.f32.mrb[0].mxu0
        %499 = vmatprep.mubr.f32.mxu0 0.0
        %500 = vmatmul.mubr.f32.gmra.mrb[0].mxu0 %v418
        %v501 = vpop.f32.mrb[0].mxu0
        %v502 = vadd.f32 %v406, %v501
        %v503 = vpop.f32.mrb[0].mxu0
        %504 = vdwg.mxu0
        %505 = vxpose.xlu0.b32.start [1/16] %v487, 128
        %506 = vxpose.xlu0.b32.cont [2/16] %v492, 128
        %507 = vxpose.xlu0.b32.cont [3/16] %v497, 128
        %508 = vxpose.xlu0.b32.cont [4/16] %v502, 128
        %509 = vxpose.xlu0.b32.cont [5/16] 0.0, 128
        %510 = vxpose.xlu0.b32.cont [6/16] 0.0, 128
        %511 = vxpose.xlu0.b32.cont [7/16] 0.0, 128
        %512 = vxpose.xlu0.b32.cont [8/16] 0.0, 128
        %513 = vxpose.xlu0.b32.cont [9/16] 0.0, 128
        %514 = vxpose.xlu0.b32.cont [10/16] 0.0, 128
        %515 = vxpose.xlu0.b32.cont [11/16] 0.0, 128
        %516 = vxpose.xlu0.b32.cont [12/16] 0.0, 128
        %517 = vxpose.xlu0.b32.cont [13/16] 0.0, 128
        %518 = vxpose.xlu0.b32.cont [14/16] 0.0, 128
        %519 = vxpose.xlu0.b32.cont [15/16] 0.0, 128
        %520 = vxpose.xlu0.b32.end [16/16] 0.0, 128
        %v521 = vpop.trf.xlu0
        %v522 = vpop.trf.xlu0
        %v523 = vpop.trf.xlu0
        %v524 = vpop.trf.xlu0
        %v525 = vpop.trf.xlu0
        %v526 = vpop.trf.xlu0
        %v527 = vpop.trf.xlu0
        %v528 = vpop.trf.xlu0
        %v529 = vpop.trf.xlu0
        %v530 = vpop.trf.xlu0
        %v531 = vpop.trf.xlu0
        %v532 = vpop.trf.xlu0
        %v533 = vpop.trf.xlu0
        %v534 = vpop.trf.xlu0
        %v535 = vpop.trf.xlu0
        %v536 = vpop.trf.xlu0
        %537 = vst.msk [vmem:[%s308] sm:$0xff] %vm323, %v521
        %538 = vst.msk [vmem:[%s308 + $0x8] sm:$0xff] %vm323, %v522
        %539 = vst.msk [vmem:[%s308 + $0x10] sm:$0xff] %vm323, %v523
        %540 = vst.msk [vmem:[%s308 + $0x18] sm:$0xff] %vm323, %v524
        %545 = vrot.lane.b32.xlu0 %v487, 96
        %v546 = vpop.permute.xlu0 %545
        %547 = vrot.lane.b32.xlu0 %v492, 96
        %v548 = vpop.permute.xlu0 %547
        %549 = vrot.lane.b32.xlu0 %v497, 96
        %v550 = vpop.permute.xlu0 %549
        %551 = vrot.lane.b32.xlu0 %v502, 96
        %v552 = vpop.permute.xlu0 %551
        %557 = vxpose.xlu0.b32.start [1/16] %v546, 128
        %558 = vxpose.xlu0.b32.cont [2/16] %v548, 128
        %559 = vxpose.xlu0.b32.cont [3/16] %v550, 128
        %560 = vxpose.xlu0.b32.cont [4/16] %v552, 128
        %561 = vxpose.xlu0.b32.cont [5/16] 0.0, 128
        %562 = vxpose.xlu0.b32.cont [6/16] 0.0, 128
        %563 = vxpose.xlu0.b32.cont [7/16] 0.0, 128
        %564 = vxpose.xlu0.b32.cont [8/16] 0.0, 128
        %565 = vxpose.xlu0.b32.cont [9/16] 0.0, 128
        %566 = vxpose.xlu0.b32.cont [10/16] 0.0, 128
        %567 = vxpose.xlu0.b32.cont [11/16] 0.0, 128
        %568 = vxpose.xlu0.b32.cont [12/16] 0.0, 128
        %569 = vxpose.xlu0.b32.cont [13/16] 0.0, 128
        %570 = vxpose.xlu0.b32.cont [14/16] 0.0, 128
        %571 = vxpose.xlu0.b32.cont [15/16] 0.0, 128
        %572 = vxpose.xlu0.b32.end [16/16] 0.0, 128
        %v573 = vpop.trf.xlu0
        %v574 = vpop.trf.xlu0
        %v575 = vpop.trf.xlu0
        %v576 = vpop.trf.xlu0
        %v577 = vpop.trf.xlu0
        %v578 = vpop.trf.xlu0
        %v579 = vpop.trf.xlu0
        %v580 = vpop.trf.xlu0
        %v581 = vpop.trf.xlu0
        %v582 = vpop.trf.xlu0
        %v583 = vpop.trf.xlu0
        %v584 = vpop.trf.xlu0
        %v585 = vpop.trf.xlu0
        %v586 = vpop.trf.xlu0
        %v587 = vpop.trf.xlu0
        %v588 = vpop.trf.xlu0
        %589 = vst.msk [vmem:[%s315] sm:$0xff] %vm323, %v573
        %590 = vst.msk [vmem:[%s315 + $0x8] sm:$0xff] %vm323, %v574
        %591 = vst.msk [vmem:[%s315 + $0x10] sm:$0xff] %vm323, %v575
        %592 = vst.msk [vmem:[%s315 + $0x18] sm:$0xff] %vm323, %v576
        %s593 = sand.u32 %s162, 1
        %s594 = scalar_lea.sflag [#allocation4], %s593
        %s595 = sand.u32 %s162, 1
        %s596 = smul.addr %s595, 32
        %s597 = scalar_lea.vmem [#allocation7], %s596
        %s598 = sand.u32 %s190, 1
        %s599 = scalar_lea.sflag [#allocation9], %s598
        %s600 = sand.u32 %s190, 1
        %s601 = smul.addr %s600, 32
        %s602 = scalar_lea.vmem [#allocation8], %s601
        // Predicated region
        $region49: #{tpu_custom_call.1} parent=39 // pred_check
          %p603 = pneg %p172
        $region50: #{tpu_custom_call.1} parent=39 // pred_check_branch
          %605 = sbr.rel (%p603) target = $region52
        $region51: #{tpu_custom_call.1} parent=39 // pred_region
          %s607 = ssub.s32 512, 512
          %608 = vsyncadd %s594, %s607
          %s609 = smul.addr %s32, 4
          %s610 = sadd.s32 %s33, %s609
          %s611 = smul.addr %s610, 128
          %s612 = scalar_lea.hbm %s5, %s611
          %s613 = sshll.u32 %s597, 4
          %s614 = int_to_ptr.vmem [resolvable:$true] %s613
          %619 = dma.vmem_to_hbm [thread:$0]  %s614, 512, %s612, %s594, 128, 128, 8
        $region52: #{tpu_custom_call.1} parent=39 // pred_fallthru
          _
        // Predicated region
        $region53: #{tpu_custom_call.1} parent=39 // pred_check
          %p620 = pneg %p200
        $region54: #{tpu_custom_call.1} parent=39 // pred_check_branch
          %622 = sbr.rel (%p620) target = $region56
        $region55: #{tpu_custom_call.1} parent=39 // pred_region
          %s624 = ssub.s32 512, 512
          %625 = vsyncadd %s599, %s624
          %s626 = smul.addr %s32, 4
          %s627 = sadd.s32 %s33, %s626
          %s628 = smul.addr %s627, 128
          %s629 = scalar_lea.hbm %s6, %s628
          %s630 = sshll.u32 %s602, 4
          %s631 = int_to_ptr.vmem [resolvable:$true] %s630
          %636 = dma.vmem_to_hbm [thread:$0]  %s631, 512, %s629, %s599, 128, 128, 8
        $region56: #{tpu_custom_call.1} parent=39 // pred_fallthru
          _
      $region40: #{tpu_custom_call.1} parent=5 // pred_fallthru
        _
      %p637 = scmp.le.s32.totalorder 2, %s23
      // Predicated region
      $region57: #{tpu_custom_call.1} parent=5 // pred_check
        %p638 = pneg %p637
      $region58: #{tpu_custom_call.1} parent=5 // pred_check_branch
        %640 = sbr.rel (%p638) target = $region60
      $region59: #{tpu_custom_call.1} parent=5 // pred_region
        %s641 = ssub.s32 %s23, 2
        // Predicated region
        $region61: #{tpu_custom_call.1} parent=59 // pred_check
          %p642 = pneg %p178
        $region62: #{tpu_custom_call.1} parent=59 // pred_check_branch
          %644 = sbr.rel (%p642) target = $region64
        $region63: #{tpu_custom_call.1} parent=59 // pred_region
          %s645 = sand.u32 %s163, 1
          %s646 = scalar_lea.sflag [#allocation4], %s645
          %s647 = sand.u32 %s163, 1
          %s648 = smul.addr %s647, 32
          %s649 = scalar_lea.vmem [#allocation7], %s648
          %650 = dma.done %s646, 512
        $region64: #{tpu_custom_call.1} parent=59 // pred_fallthru
          _
        // Predicated region
        $region65: #{tpu_custom_call.1} parent=59 // pred_check
          %p651 = pneg %p206
        $region66: #{tpu_custom_call.1} parent=59 // pred_check_branch
          %653 = sbr.rel (%p651) target = $region68
        $region67: #{tpu_custom_call.1} parent=59 // pred_region
          %s654 = sand.u32 %s191, 1
          %s655 = scalar_lea.sflag [#allocation9], %s654
          %s656 = sand.u32 %s191, 1
          %s657 = smul.addr %s656, 32
          %s658 = scalar_lea.vmem [#allocation8], %s657
          %659 = dma.done %s655, 512
        $region68: #{tpu_custom_call.1} parent=59 // pred_fallthru
          _
      $region60: #{tpu_custom_call.1} parent=5 // pred_fallthru
        _
    $region6: #{tpu_custom_call.1} parent=1 // loop_footer
      %s27 = sadd.s32 1, %s23
    $region7: #{tpu_custom_call.1} parent=1 // loop_footer_branch
      %22 = sbr.rel target = $region3
    $region8: #{tpu_custom_call.1} parent=1 // loop_exit
      _
    %660 = vsyncpa [#allocation3], 1
    %s661 = scalar_lea.sflag [#allocation3], 1
    %662 = vsyncpa %s661, 1
    %663 = vsyncpa [#allocation6], 1
    %664 = vsyncpa [#allocation4], 1
    %s665 = scalar_lea.sflag [#allocation4], 1
    %666 = vsyncpa %s665, 1
    %667 = vsyncpa [#allocation9], 1
    %s668 = scalar_lea.sflag [#allocation9], 1
    %669 = vsyncpa %s668, 1

</llo_original>
